<compile_context>
chip_gen: v7x
topology: tpu7x:2x2x1
jax: 0.10.0
libtpu: 0.0.40
codegen_flags: <defaults>
</compile_context>

<pallas_src>
import jax
import jax.numpy as jnp
from jax.experimental import pallas as pl
from jax.experimental.pallas import tpu as pltpu

IN_FEATURES = 65

_VMEM_BUDGET = 24 << 20   # cap on the double-buffered working set (v7x-safe)
_MIN_PAYLOAD = 1 << 20    # target >= ~1 MiB of HBM traffic per grid step


def _round_up(x, m):
    return (x + m - 1) // m * m


def _divisors(n):
    out = set()
    d = 1
    while d * d <= n:
        if n % d == 0:
            out.add(d)
            out.add(n // d)
        d += 1
    return sorted(out)


def _largest_mult128_divisor(hw, cap):
    """Largest divisor of hw that is a multiple of 128 and <= cap (128 floor)."""
    assert hw % 128 == 0
    m = hw // 128
    cap_m = max(1, cap // 128)
    best = 1
    for d in _divisors(m):
        if d <= cap_m and d > best:
            best = d
    return 128 * best


def _lsm_kernel(w_ref, x1_ref, x_ref, xout_ref, gate_ref):
    # w_ref:    (65, 1)      resident weight column
    # x1_ref:   (nb, 65, T)  gate input: channels on sublanes / pixels on lanes
    # x_ref:    (nb, Cx, T)
    # xout_ref: (nb, Cx, T)
    # gate_ref: (nb, 1, T)
    # 65->1 projection on the VPU (broadcast-mul + sublane reduce); avoids a
    # degenerate (K=65, N=1) MXU matmul.
    w = w_ref[...]                                                    # (65, 1)
    s = jnp.sum(x1_ref[...] * w[None, :, :], axis=1, keepdims=True)   # (nb, 1, T)
    g = jax.nn.sigmoid(jnp.maximum(s, 0.0))                           # relu -> sigmoid
    gate_ref[...] = g.astype(gate_ref.dtype)
    # x - 0.5 * (x * g) == x * (1 - 0.5 * g); gate broadcasts over channels.
    xout_ref[...] = (x_ref[...] * (1.0 - 0.5 * g)).astype(xout_ref.dtype)


def lsm_forward(x, x1, weight, *, tile_hw=8192):
    """x: (N, Cx, H, W); x1: (N, 65, H, W); weight: (1, 65) (torch Linear layout)."""
    N, Cx, H, W = x.shape
    assert x1.shape == (N, IN_FEATURES, H, W)
    HW = H * W

    # Channel-major slabs: free reshapes, no HBM transpose traffic.
    x1_3 = x1.reshape(N, IN_FEATURES, HW)
    x_3 = x.reshape(N, Cx, HW)

    # ---- Tile selection (no padding on the hot path) ------------------------
    # HBM bytes per pixel per image (f32, sublane-padded channel counts).
    bpp = 4 * (_round_up(IN_FEATURES, 8) + 2 * _round_up(Cx, 8) + 8)
    tile_hw = max(128, (tile_hw // 128) * 128)          # sanitize: multiple of 128
    t_cap = max(128, min(tile_hw, (_VMEM_BUDGET // (2 * bpp)) // 128 * 128))

    pad = 0
    if HW % 128 == 0:
        # Exact multiple-of-128 divisor of HW -> no pad, no output slice.
        t = _largest_mult128_divisor(HW, t_cap)
        # Megacore (v7x): prefer >= 4 grid steps so both TensorCores stay fed.
        while N * (HW // t) < 4 and t > 128:
            smaller = _largest_mult128_divisor(HW, t // 2)
            if smaller >= t:
                break
            t = smaller
    elif 2 * bpp * HW <= _VMEM_BUDGET:
        # Small non-128-multiple pixel count: one full-extent pixel block.
        t = HW
    else:
        # Rare: large pixel count not divisible by 128 -> pad to the next
        # multiple of 128 and slice the outputs afterwards.
        pad = (-HW) % 128
        padspec = ((0, 0), (0, 0), (0, pad))
        x1_3 = jnp.pad(x1_3, padspec)
        x_3 = jnp.pad(x_3, padspec)
        t = _largest_mult128_divisor(HW + pad, t_cap)

    HW_work = HW + pad
    grid_hw = HW_work // t

    # Batch several images per grid step when a single-image tile is tiny, so
    # each step still moves >= ~1 MiB (keeps pipeline overhead amortized).
    # nb divides N (no ragged N-blocks); keep >= 2 total steps when possible.
    payload = t * bpp
    nb = 1
    if payload < _MIN_PAYLOAD:
        for cand in _divisors(N):
            if 2 * cand * payload > _VMEM_BUDGET:
                break
            if cand > 1 and (N // cand) * grid_hw < 2:
                break
            nb = cand
            if cand * payload >= _MIN_PAYLOAD:
                break

    grid = (N // nb, grid_hw)

    w_col = weight.reshape(1, IN_FEATURES).T.astype(jnp.float32)      # (65, 1)

    P = N * HW
    cost = pl.CostEstimate(
        flops=2 * P * IN_FEATURES + 3 * P * Cx,
        transcendentals=P,
        bytes_accessed=4 * P * (IN_FEATURES + 2 * Cx + 1),
    )

    ws_bytes = 2 * nb * t * bpp                       # double-buffered working set
    vmem_limit = int(min(48 << 20, max(32 << 20, 2 * ws_bytes)))

    x_out_3, gate_3 = pl.pallas_call(
        _lsm_kernel,
        out_shape=(
            jax.ShapeDtypeStruct((N, Cx, HW_work), x.dtype),
            jax.ShapeDtypeStruct((N, 1, HW_work), x.dtype),
        ),
        grid_spec=pltpu.PrefetchScalarGridSpec(
            num_scalar_prefetch=0,
            grid=grid,
            in_specs=[
                # weight: constant block index -> resident, no per-step re-DMA
                pl.BlockSpec((IN_FEATURES, 1), lambda n, j: (0, 0)),
                pl.BlockSpec((nb, IN_FEATURES, t), lambda n, j: (n, 0, j)),
                pl.BlockSpec((nb, Cx, t), lambda n, j: (n, 0, j)),
            ],
            out_specs=[
                pl.BlockSpec((nb, Cx, t), lambda n, j: (n, 0, j)),
                pl.BlockSpec((nb, 1, t), lambda n, j: (n, 0, j)),
            ],
        ),
        compiler_params=pltpu.CompilerParams(
            dimension_semantics=("parallel", "parallel"),
            vmem_limit_bytes=vmem_limit,
        ),
        cost_estimate=cost,
        # x and x_out share block shape + index_map: alias to halve HBM footprint.
        input_output_aliases={2: 0},
    )(w_col, x1_3, x_3)

    if pad:
        x_out_3 = x_out_3[:, :, :HW]
        gate_3 = gate_3[:, :, :HW]
    x_out = x_out_3.reshape(N, Cx, H, W)
    x_fc = gate_3.reshape(N, 1, H, W)
    return x_out, x_fc


def _reference(x, x1, weight):
    # Pure-JAX reference of the PyTorch forward.
    x_fc = jnp.einsum("nchw,oc->nohw", x1, weight)   # Linear over the channel dim
    x_fc = jax.nn.sigmoid(jnp.maximum(x_fc, 0.0))
    x1m = x * x_fc
    return x - 0.5 * x1m, x_fc


if __name__ == "__main__":
    key = jax.random.PRNGKey(0)
    k_w, k_x, k_x1 = jax.random.split(key, 3)

    N, Cx, H, W = 2, 4, 16, 8   # HW = 128 -> one exact lane-dense tile per image

    # PyTorch Linear default init: U(-1/sqrt(fan_in), 1/sqrt(fan_in))
    bound = 1.0 / jnp.sqrt(jnp.float32(IN_FEATURES))
    weight = jax.random.uniform(k_w, (1, IN_FEATURES), jnp.float32, -bound, bound)

    x = jax.random.normal(k_x, (N, Cx, H, W), jnp.float32)
    x1 = jax.random.normal(k_x1, (N, IN_FEATURES, H, W), jnp.float32)

    # Compute the reference before the kernel (x is aliased into the x-output).
    out_ref, gate_ref = _reference(x, x1, weight)

    out, gate = lsm_forward(x, x1, weight)
    out = jax.block_until_ready(out)
    gate = jax.block_until_ready(gate)

    assert out.shape == (N, Cx, H, W) and gate.shape == (N, 1, H, W)
    assert jnp.allclose(out, out_ref, atol=1e-5, rtol=1e-5)
    assert jnp.allclose(gate, gate_ref, atol=1e-5, rtol=1e-5)

    print("KERNEL_OK")
</pallas_src>

<mosaic_0001>
module attributes {stable_mosaic.version = 11 : i64} {
  func.func @_lsm_kernel(%arg0: i32, %arg1: i32, %arg2: memref<65x1xf32, #tpu.memory_space<vmem>>, %arg3: memref<1x65x128xf32, #tpu.memory_space<vmem>>, %arg4: memref<1x4x128xf32, #tpu.memory_space<vmem>>, %arg5: memref<1x4x128xf32, #tpu.memory_space<vmem>>, %arg6: memref<1x1x128xf32, #tpu.memory_space<vmem>>) attributes {dimension_semantics = [#tpu.dimension_semantics<parallel>, #tpu.dimension_semantics<parallel>], iteration_bounds = array<i64: 2, 1>, scalar_prefetch = 0 : i64, scratch_operands = 0 : i64, tpu.core_type = #tpu.core_type<tc>, window_params = [{pipeline_mode = #tpu.pipeline_mode<synchronous>, transform_indices = @transform_0, window_bounds = array<i64: 65, 1>}, {transform_indices = @transform_1, window_bounds = array<i64: 1, 65, 128>}, {transform_indices = @transform_2, window_bounds = array<i64: 1, 4, 128>}, {transform_indices = @transform_3, window_bounds = array<i64: 1, 4, 128>}, {transform_indices = @transform_4, window_bounds = array<i64: 1, 1, 128>}]} {
    %c0 = arith.constant 0 : index
    %c0_0 = arith.constant 0 : index
    %0 = vector.load %arg2[%c0, %c0_0] : memref<65x1xf32, #tpu.memory_space<vmem>>, vector<65x1xf32>
    %c0_1 = arith.constant 0 : index
    %c0_2 = arith.constant 0 : index
    %c0_3 = arith.constant 0 : index
    %1 = vector.load %arg3[%c0_1, %c0_2, %c0_3] : memref<1x65x128xf32, #tpu.memory_space<vmem>>, vector<1x65x128xf32>
    %2 = vector.shape_cast %0 : vector<65x1xf32> to vector<1x65x1xf32>
    %3 = vector.broadcast %2 : vector<1x65x1xf32> to vector<1x65x128xf32>
    %4 = arith.mulf %1, %3 : vector<1x65x128xf32>
    %cst = arith.constant dense<0.000000e+00> : vector<1x128xf32>
    %5 = vector.multi_reduction <add>, %4, %cst [1] : vector<1x65x128xf32> to vector<1x128xf32>
    %6 = vector.shape_cast %5 : vector<1x128xf32> to vector<1x1x128xf32>
    %cst_4 = arith.constant 0.000000e+00 : f32
    %7 = vector.broadcast %cst_4 : f32 to vector<1x1x128xf32>
    %8 = arith.maximumf %6, %7 : vector<1x1x128xf32>
    %9 = arith.negf %8 : vector<1x1x128xf32>
    %10 = math.exp %9 : vector<1x1x128xf32>
    %cst_5 = arith.constant 1.000000e+00 : f32
    %11 = vector.broadcast %cst_5 : f32 to vector<1x1x128xf32>
    %12 = arith.addf %11, %10 : vector<1x1x128xf32>
    %13 = arith.divf %11, %12 : vector<1x1x128xf32>
    %c0_6 = arith.constant 0 : index
    %c0_7 = arith.constant 0 : index
    %c0_8 = arith.constant 0 : index
    %14 = vector.load %arg6[%c0_6, %c0_7, %c0_8] : memref<1x1x128xf32, #tpu.memory_space<vmem>>, vector<1x1x128xf32>
    tpu.vector_store %arg6[%c0_6, %c0_7, %c0_8], %13 {strides = array<i32>} : memref<1x1x128xf32, #tpu.memory_space<vmem>>, vector<1x1x128xf32>,
    %c0_9 = arith.constant 0 : index
    %c0_10 = arith.constant 0 : index
    %c0_11 = arith.constant 0 : index
    %15 = vector.load %arg4[%c0_9, %c0_10, %c0_11] : memref<1x4x128xf32, #tpu.memory_space<vmem>>, vector<1x4x128xf32>
    %cst_12 = arith.constant 5.000000e-01 : f32
    %16 = vector.broadcast %cst_12 : f32 to vector<1x1x128xf32>
    %17 = arith.mulf %16, %13 : vector<1x1x128xf32>
    %cst_13 = arith.constant 1.000000e+00 : f32
    %18 = vector.broadcast %cst_13 : f32 to vector<1x1x128xf32>
    %19 = arith.subf %18, %17 : vector<1x1x128xf32>
    %20 = vector.broadcast %19 : vector<1x1x128xf32> to vector<1x4x128xf32>
    %21 = arith.mulf %15, %20 : vector<1x4x128xf32>
    %c0_14 = arith.constant 0 : index
    %c0_15 = arith.constant 0 : index
    %c0_16 = arith.constant 0 : index
    %22 = vector.load %arg5[%c0_14, %c0_15, %c0_16] : memref<1x4x128xf32, #tpu.memory_space<vmem>>, vector<1x4x128xf32>
    tpu.vector_store %arg5[%c0_14, %c0_15, %c0_16], %21 {strides = array<i32>} : memref<1x4x128xf32, #tpu.memory_space<vmem>>, vector<1x4x128xf32>,
    return
  }
  func.func @transform_0(%arg0: i32, %arg1: i32) -> (i32, i32) {
    %c0_i32 = arith.constant 0 : i32
    %c0_i32_0 = arith.constant 0 : i32
    %c0_i32_1 = arith.constant 0 : i32
    return %c0_i32, %c0_i32_0 : i32, i32
  }
  func.func @transform_1(%arg0: i32, %arg1: i32) -> (i32, i32, i32) {
    %c0_i32 = arith.constant 0 : i32
    %c0_i32_0 = arith.constant 0 : i32
    return %arg0, %c0_i32, %arg1 : i32, i32, i32
  }
  func.func @transform_2(%arg0: i32, %arg1: i32) -> (i32, i32, i32) {
    %c0_i32 = arith.constant 0 : i32
    %c0_i32_0 = arith.constant 0 : i32
    return %arg0, %c0_i32, %arg1 : i32, i32, i32
  }
  func.func @transform_3(%arg0: i32, %arg1: i32) -> (i32, i32, i32) {
    %c0_i32 = arith.constant 0 : i32
    %c0_i32_0 = arith.constant 0 : i32
    return %arg0, %c0_i32, %arg1 : i32, i32, i32
  }
  func.func @transform_4(%arg0: i32, %arg1: i32) -> (i32, i32, i32) {
    %c0_i32 = arith.constant 0 : i32
    %c0_i32_0 = arith.constant 0 : i32
    return %arg0, %c0_i32, %arg1 : i32, i32, i32
  }
}

</mosaic_0001>

<llo_original>
// kernel: tpu_custom_call.1
$region0: #{tpu_custom_call.1}
  #allocation0 [shape = 'u32[]', space=smem, size = 0x4, offset = 0x4, fixed_abs, tag = 'smem constant byte address 0x4 - core index']
  #allocation1 [shape = 'u32[144,128]{1,0:T(1,128)}', space=vmem, size = 0x12000, scoped, tag = 'internal scratch']
  %s0 = inlined_call_operand.vmem [shape: f32[65,1], index: 0, kind: input, shape index: {}]
  %s1 = inlined_call_operand.vmem [shape: f32[2,65,128], index: 1, kind: input, shape index: {}]
  %s2 = inlined_call_operand.hbm [shape: f32[2,4,128], index: 2, kind: input, shape index: {}, may-alias: {2,3}]
  %s3 = inlined_call_operand.hbm [shape: f32[2,4,128], index: 3, kind: output, shape index: {0}, may-alias: {2,3}]
  %s4 = inlined_call_operand.hbm [shape: f32[2,1,128], index: 4, kind: output, shape index: {1}]
  %5 = xla_tuple %s3, %s4
  %s6 = sld [smem:[#allocation0]]
  $region57: #{tpu_custom_call.1} parent=0
    _
  %s8 = ssub.s32 1, %s6
  %s9 = scalar_select 0, %s8, %s6
  $region1: #{tpu_custom_call.1} parent=0
    #allocation2 [shape = 'u8[4096]{0}', space=vmem, size = 0x1000, scoped, tag = 'input window, operand 2']
    #allocation3 [shape = 's32[2]{0}', space=sflag, size = 0x8, scoped, tag = 'scoped memory for tpu_custom_call.1']
    #allocation4 [shape = 's32[2]{0}', space=sflag, size = 0x8, scoped, tag = 'scoped memory for tpu_custom_call.1']
    #allocation5 [shape = 'u8[4096]{0}', space=vmem, size = 0x1000, scoped, tag = 'output window, operand 0']
    #allocation6 [shape = 'u8[1024]{0}', space=vmem, size = 0x400, scoped, tag = 'output window, operand 1']
    #allocation7 [shape = 's32[2]{0}', space=sflag, size = 0x8, scoped, tag = 'scoped memory for tpu_custom_call.1']
    %10 = vsyncpa [#allocation3], 0
    %s11 = scalar_lea.sflag [#allocation3], 1
    %12 = vsyncpa %s11, 0
    %13 = vsyncpa [#allocation4], 0
    %s14 = scalar_lea.sflag [#allocation4], 1
    %15 = vsyncpa %s14, 0
    %16 = vsyncpa [#allocation7], 0
    %s17 = scalar_lea.sflag [#allocation7], 1
    %18 = vsyncpa %s17, 0
    loop: start=0, step=1, limit=4
    $region2: #{tpu_custom_call.1} parent=1 // loop_pre_header
      _
    $region3: #{tpu_custom_call.1} parent=1 // loop_header
      %s20 = sphi 0, %s24
      %p21 = scmp.ge.s32.totalorder %s20, 4
      %s27 = sphi 0, %s39
      %s28 = sphi 0, %s35
      %s29 = sphi 0, %s27
      %s30 = sphi 0, %s28
      %s31 = sphi 0, %s29
      %s32 = sphi 0, %s30
      %s40 = sphi 0, %s40
      %s42 = sphi 0, %s40
      %s43 = sphi 0, %s42
      %s57 = sphi 0, %s43
      %s65 = sphi 0, %s67
      %s68 = sphi 0, %s65
      %s69 = sphi 0, %s68
      %s85 = sphi 0, %s69
      %s93 = sphi 0, %s95
      %s96 = sphi 0, %s93
      %s97 = sphi 0, %s96
      %s113 = sphi 0, %s97
      %s121 = sphi 0, %s123
      %s124 = sphi 0, %s121
      %s125 = sphi 0, %s124
      %s141 = sphi 0, %s125
      %s149 = sphi 0, %s151
      %s152 = sphi 0, %s149
      %s153 = sphi 0, %s152
      %s169 = sphi 0, %s153
    $region4: #{tpu_custom_call.1} parent=1 // loop_header_branch
      %23 = sbr.rel (%p21) target = $region8
    $region5: #{tpu_custom_call.1} parent=1 // loop_body
      %s25 = ssub.s32 %s20, 1
      %s26 = ssub.s32 %s20, 2
      %s33 = sadd.s32 1, %s28
      %p34 = scmp.ge.s32.totalorder %s33, 1
      %s35 = scalar_select %p34, 0, %s33
      %s36 = sadd.s32 1, %s27
      %s37 = scalar_select %p34, %s36, %s27
      %p38 = scmp.ge.s32.totalorder %s37, 2
      %s39 = scalar_select %p38, 0, %s37
      %s41 = sadd.s32 %s40, 1
      %p44 = scmp.eq.s32.totalorder %s20, 1
      %p45 = scmp.ne.s32.totalorder %s40, %s42
      %p46 = scmp.eq.s32.totalorder %s20, 0
      %p47 = por %p45, %p46
      %p48 = scmp.ne.s32.totalorder %s40, %s42
      %p49 = scmp.eq.s32.totalorder %s25, 1
      %p50 = por %p48, %p49
      %p51 = scmp.ne.s32.totalorder %s42, %s43
      %p52 = scmp.eq.s32.totalorder %s25, 0
      %p53 = por %p51, %p52
      %p54 = scmp.ne.s32.totalorder %s42, %s43
      %p55 = scmp.eq.s32.totalorder %s26, 1
      %p56 = por %p54, %p55
      %p58 = scmp.ne.s32.totalorder %s43, %s57
      %p59 = scmp.eq.s32.totalorder %s26, 0
      %p60 = por %p58, %p59
      %s61 = ssub.s32 %s27, %s39
      %s62 = ssub.s32 %s28, %s35
      %s63 = sor.u32 %s61, %s62
      %p64 = scmp.eq.s32.totalorder %s63, 0
      %s66 = sadd.s32 %s65, 1
      %s67 = scalar_select %p64, %s65, %s66
      %p70 = pneg %p64
      %p71 = scmp.eq.s32.totalorder %s20, 1
      %p72 = por %p70, %p71
      %p73 = scmp.ne.s32.totalorder %s65, %s68
      %p74 = scmp.eq.s32.totalorder %s20, 0
      %p75 = por %p73, %p74
      %p76 = scmp.ne.s32.totalorder %s65, %s68
      %p77 = scmp.eq.s32.totalorder %s25, 1
      %p78 = por %p76, %p77
      %p79 = scmp.ne.s32.totalorder %s68, %s69
      %p80 = scmp.eq.s32.totalorder %s25, 0
      %p81 = por %p79, %p80
      %p82 = scmp.ne.s32.totalorder %s68, %s69
      %p83 = scmp.eq.s32.totalorder %s26, 1
      %p84 = por %p82, %p83
      %p86 = scmp.ne.s32.totalorder %s69, %s85
      %p87 = scmp.eq.s32.totalorder %s26, 0
      %p88 = por %p86, %p87
      %s89 = ssub.s32 %s27, %s39
      %s90 = ssub.s32 %s28, %s35
      %s91 = sor.u32 %s89, %s90
      %p92 = scmp.eq.s32.totalorder %s91, 0
      %s94 = sadd.s32 %s93, 1
      %s95 = scalar_select %p92, %s93, %s94
      %p98 = pneg %p92
      %p99 = scmp.eq.s32.totalorder %s20, 1
      %p100 = por %p98, %p99
      %p101 = scmp.ne.s32.totalorder %s93, %s96
      %p102 = scmp.eq.s32.totalorder %s20, 0
      %p103 = por %p101, %p102
      %p104 = scmp.ne.s32.totalorder %s93, %s96
      %p105 = scmp.eq.s32.totalorder %s25, 1
      %p106 = por %p104, %p105
      %p107 = scmp.ne.s32.totalorder %s96, %s97
      %p108 = scmp.eq.s32.totalorder %s25, 0
      %p109 = por %p107, %p108
      %p110 = scmp.ne.s32.totalorder %s96, %s97
      %p111 = scmp.eq.s32.totalorder %s26, 1
      %p112 = por %p110, %p111
      %p114 = scmp.ne.s32.totalorder %s97, %s113
      %p115 = scmp.eq.s32.totalorder %s26, 0
      %p116 = por %p114, %p115
      %s117 = ssub.s32 %s27, %s39
      %s118 = ssub.s32 %s28, %s35
      %s119 = sor.u32 %s117, %s118
      %p120 = scmp.eq.s32.totalorder %s119, 0
      %s122 = sadd.s32 %s121, 1
      %s123 = scalar_select %p120, %s121, %s122
      %p126 = pneg %p120
      %p127 = scmp.eq.s32.totalorder %s20, 1
      %p128 = por %p126, %p127
      %p129 = scmp.ne.s32.totalorder %s121, %s124
      %p130 = scmp.eq.s32.totalorder %s20, 0
      %p131 = por %p129, %p130
      %p132 = scmp.ne.s32.totalorder %s121, %s124
      %p133 = scmp.eq.s32.totalorder %s25, 1
      %p134 = por %p132, %p133
      %p135 = scmp.ne.s32.totalorder %s124, %s125
      %p136 = scmp.eq.s32.totalorder %s25, 0
      %p137 = por %p135, %p136
      %p138 = scmp.ne.s32.totalorder %s124, %s125
      %p139 = scmp.eq.s32.totalorder %s26, 1
      %p140 = por %p138, %p139
      %p142 = scmp.ne.s32.totalorder %s125, %s141
      %p143 = scmp.eq.s32.totalorder %s26, 0
      %p144 = por %p142, %p143
      %s145 = ssub.s32 %s27, %s39
      %s146 = ssub.s32 %s28, %s35
      %s147 = sor.u32 %s145, %s146
      %p148 = scmp.eq.s32.totalorder %s147, 0
      %s150 = sadd.s32 %s149, 1
      %s151 = scalar_select %p148, %s149, %s150
      %p154 = pneg %p148
      %p155 = scmp.eq.s32.totalorder %s20, 1
      %p156 = por %p154, %p155
      %p157 = scmp.ne.s32.totalorder %s149, %s152
      %p158 = scmp.eq.s32.totalorder %s20, 0
      %p159 = por %p157, %p158
      %p160 = scmp.ne.s32.totalorder %s149, %s152
      %p161 = scmp.eq.s32.totalorder %s25, 1
      %p162 = por %p160, %p161
      %p163 = scmp.ne.s32.totalorder %s152, %s153
      %p164 = scmp.eq.s32.totalorder %s25, 0
      %p165 = por %p163, %p164
      %p166 = scmp.ne.s32.totalorder %s152, %s153
      %p167 = scmp.eq.s32.totalorder %s26, 1
      %p168 = por %p166, %p167
      %p170 = scmp.ne.s32.totalorder %s153, %s169
      %p171 = scmp.eq.s32.totalorder %s26, 0
      %p172 = por %p170, %p171
      %p173 = scmp.le.s32.totalorder 1, %s20
      %p174 = scmp.lt.s32.totalorder %s20, 3
      %p175 = pnand %p173, %p174
      %p176 = pneg %p175
      // Predicated region
      $region9: #{tpu_custom_call.1} parent=5 // pred_check
        _
      $region10: #{tpu_custom_call.1} parent=5 // pred_check_branch
        %178 = sbr.rel (%p175) target = $region12
      $region11: #{tpu_custom_call.1} parent=5 // pred_region
        %s179 = ssub.s32 %s20, 1
        // Predicated region
        $region13: #{tpu_custom_call.1} parent=11 // pred_check
          %p180 = pneg %p53
        $region14: #{tpu_custom_call.1} parent=11 // pred_check_branch
          %182 = sbr.rel (%p180) target = $region16
        $region15: #{tpu_custom_call.1} parent=11 // pred_region
          _
        $region16: #{tpu_custom_call.1} parent=11 // pred_fallthru
          _
      $region12: #{tpu_custom_call.1} parent=5 // pred_fallthru
        _
      %p183 = scmp.lt.s32.totalorder %s20, 2
      // Predicated region
      $region17: #{tpu_custom_call.1} parent=5 // pred_check
        %p184 = pneg %p183
      $region18: #{tpu_custom_call.1} parent=5 // pred_check_branch
        %186 = sbr.rel (%p184) target = $region20
      $region19: #{tpu_custom_call.1} parent=5 // pred_region
        // Predicated region
        $region21: #{tpu_custom_call.1} parent=19 // pred_check
          %p187 = pneg %p75
        $region22: #{tpu_custom_call.1} parent=19 // pred_check_branch
          %189 = sbr.rel (%p187) target = $region24
        $region23: #{tpu_custom_call.1} parent=19 // pred_region
          %p190 = scmp.lt.s32.totalorder %s27, 1
          %s191 = scalar_select %p190, %s27, 1
          %p192 = scmp.lt.s32.totalorder %s28, 0
          %s193 = scalar_select %p192, %s28, 0
          %s194 = smul.addr %s191, 9
          %s195 = sadd.s32 %s193, %s194
          %s196 = smul.addr %s195, 8
          %s197 = scalar_lea.vmem %s1, %s196
        $region24: #{tpu_custom_call.1} parent=19 // pred_fallthru
          _
        // Predicated region
        $region25: #{tpu_custom_call.1} parent=19 // pred_check
          %p198 = pneg %p103
        $region26: #{tpu_custom_call.1} parent=19 // pred_check_branch
          %200 = sbr.rel (%p198) target = $region28
        $region27: #{tpu_custom_call.1} parent=19 // pred_region
          %s201 = sand.u32 %s93, 1
          %s202 = scalar_lea.sflag [#allocation3], %s201
          %s203 = sand.u32 %s93, 1
          %s204 = smul.addr %s203, 4
          %s205 = scalar_lea.vmem [#allocation2], %s204
          %s207 = ssub.s32 64, 64
          %208 = vsyncadd %s202, %s207
          %s209 = sadd.s32 %s28, %s27
          %s210 = smul.addr %s209, 64
          %s211 = scalar_lea.hbm %s2, %s210
          %s213 = sshll.u32 %s205, 4
          %s214 = int_to_ptr.vmem [resolvable:$true] %s213
          %216 = dma.hbm_to_vmem [thread:$0]  %s211, 64, %s214, %s202
        $region28: #{tpu_custom_call.1} parent=19 // pred_fallthru
          _
      $region20: #{tpu_custom_call.1} parent=5 // pred_fallthru
        _
      %p217 = scmp.le.s32.totalorder 1, %s20
      %p218 = scmp.lt.s32.totalorder %s20, 3
      %p219 = pnand %p217, %p218
      %p220 = pneg %p219
      // Predicated region
      $region29: #{tpu_custom_call.1} parent=5 // pred_check
        _
      $region30: #{tpu_custom_call.1} parent=5 // pred_check_branch
        %222 = sbr.rel (%p219) target = $region32
      $region31: #{tpu_custom_call.1} parent=5 // pred_region
        %s223 = ssub.s32 %s20, 1
        %s224 = sand.u32 %s96, 1
        %s225 = scalar_lea.sflag [#allocation3], %s224
        %s226 = sand.u32 %s96, 1
        %s227 = smul.addr %s226, 4
        %s228 = scalar_lea.vmem [#allocation2], %s227
        // Predicated region
        $region33: #{tpu_custom_call.1} parent=31 // pred_check
          %p229 = pneg %p109
        $region34: #{tpu_custom_call.1} parent=31 // pred_check_branch
          %231 = sbr.rel (%p229) target = $region36
        $region35: #{tpu_custom_call.1} parent=31 // pred_region
          %232 = dma.done %s225, 64
        $region36: #{tpu_custom_call.1} parent=31 // pred_fallthru
          _
        %p233 = pneg %p53
        %p234 = pneg %p50
        %p235 = scmp.lt.s32.totalorder %s29, 1
        %s236 = scalar_select %p235, %s29, 1
        %p237 = scmp.lt.s32.totalorder %s30, 0
        %s238 = scalar_select %p237, %s30, 0
        %s239 = smul.addr %s236, 9
        %s240 = sadd.s32 %s238, %s239
        %s241 = smul.addr %s240, 8
        %s242 = scalar_lea.vmem %s1, %s241
        %p243 = pneg %p81
        %p244 = pneg %p78
        %s245 = sand.u32 %s96, 1
        %s246 = scalar_lea.sflag [#allocation3], %s245
        %s247 = sand.u32 %s96, 1
        %s248 = smul.addr %s247, 4
        %s249 = scalar_lea.vmem [#allocation2], %s248
        %p250 = pneg %p109
        %p251 = pneg %p106
        %p252 = pneg %p137
        %p253 = pneg %p134
        %s254 = sand.u32 %s124, 1
        %s255 = scalar_lea.sflag [#allocation4], %s254
        %s256 = sand.u32 %s124, 1
        %s257 = smul.addr %s256, 4
        %s258 = scalar_lea.vmem [#allocation5], %s257
        %p259 = pneg %p165
        %p260 = pneg %p162
        %s261 = sand.u32 %s152, 1
        %s262 = scalar_lea.sflag [#allocation7], %s261
        %s263 = sand.u32 %s152, 1
        %s264 = scalar_lea.vmem [#allocation6], %s263
        %p265 = scmp.lt.s32.totalorder %s29, 1
        %s266 = scalar_select %p265, %s29, 1
        %p267 = scmp.lt.s32.totalorder %s30, 0
        %s268 = scalar_select %p267, %s30, 0
        %s269 = smul.addr %s266, 9
        %s270 = sadd.s32 %s268, %s269
        %s271 = smul.addr %s270, 8
        %s272 = scalar_lea.vmem %s1, %s271
        %v273 = vld [vmem:[%s0] sm:$0xff]
        %v274 = vld [vmem:[%s0 + $0x8] sm:$0xff]
        %v275 = vld [vmem:[%s0 + $0x10] sm:$0xff]
        %v276 = vld [vmem:[%s0 + $0x18] sm:$0xff]
        %v277 = vld [vmem:[%s0 + $0x20] sm:$0xff]
        %v278 = vld [vmem:[%s0 + $0x28] sm:$0xff]
        %v279 = vld [vmem:[%s0 + $0x30] sm:$0xff]
        %v280 = vld [vmem:[%s0 + $0x38] sm:$0xff]
        %v281 = vld [vmem:[%s0 + $0x40] sm:$0x1]
        %v282 = vld [vmem:[%s272] sm:$0xff]
        %v283 = vld [vmem:[%s272 + $0x8] sm:$0xff]
        %v284 = vld [vmem:[%s272 + $0x10] sm:$0xff]
        %v285 = vld [vmem:[%s272 + $0x18] sm:$0xff]
        %v286 = vld [vmem:[%s272 + $0x20] sm:$0xff]
        %v287 = vld [vmem:[%s272 + $0x28] sm:$0xff]
        %v288 = vld [vmem:[%s272 + $0x30] sm:$0xff]
        %v289 = vld [vmem:[%s272 + $0x38] sm:$0xff]
        %v290 = vld [vmem:[%s272 + $0x40] sm:$0x1]
        %292 = vset.pattern.permute.xlu0 0
        %293 = vperm.xlu0 %292, %v273
        %v294 = vpop.permute.xlu0 %293
        %297 = vset.pattern.permute.xlu0 0
        %298 = vperm.xlu0 %297, %v274
        %v299 = vpop.permute.xlu0 %298
        %302 = vset.pattern.permute.xlu0 0
        %303 = vperm.xlu0 %302, %v275
        %v304 = vpop.permute.xlu0 %303
        %307 = vset.pattern.permute.xlu0 0
        %308 = vperm.xlu0 %307, %v276
        %v309 = vpop.permute.xlu0 %308
        %312 = vset.pattern.permute.xlu0 0
        %313 = vperm.xlu0 %312, %v277
        %v314 = vpop.permute.xlu0 %313
        %317 = vset.pattern.permute.xlu0 0
        %318 = vperm.xlu0 %317, %v278
        %v319 = vpop.permute.xlu0 %318
        %322 = vset.pattern.permute.xlu0 0
        %323 = vperm.xlu0 %322, %v279
        %v324 = vpop.permute.xlu0 %323
        %327 = vset.pattern.permute.xlu0 0
        %328 = vperm.xlu0 %327, %v280
        %v329 = vpop.permute.xlu0 %328
        %332 = vset.pattern.permute.xlu0 0
        %333 = vperm.xlu0 %332, %v281
        %v334 = vpop.permute.xlu0 %333
        %v336 = vmul.f32 %v282, %v294
        %v337 = vmul.f32 %v283, %v299
        %v338 = vmul.f32 %v284, %v304
        %v339 = vmul.f32 %v285, %v309
        %v340 = vmul.f32 %v286, %v314
        %v341 = vmul.f32 %v287, %v319
        %v342 = vmul.f32 %v288, %v324
        %v343 = vmul.f32 %v289, %v329
        %v344 = vmul.f32 %v290, %v334
        %v345 = vadd.f32 %v336, %v337
        %v346 = vadd.f32 %v345, %v338
        %v347 = vadd.f32 %v346, %v339
        %v348 = vadd.f32 %v347, %v340
        %v349 = vadd.f32 %v348, %v341
        %v350 = vadd.f32 %v349, %v342
        %v351 = vadd.f32 %v350, %v343
        %vm352 = vcmask 1040384
        %v353 = vsel %vm352, %v344, 0.0
        %v354 = vadd.f32 %v351, %v353
        %v355 = vrot.slane %v354, 4
        %v356 = vadd.f32 %v354, %v355
        %v357 = vrot.slane %v356, 2
        %v358 = vadd.f32 %v356, %v357
        %v359 = vrot.slane %v358, 1
        %v360 = vadd.f32 %v358, %v359
        %v361 = vmax.f32 %v360, 0.0
        %v362 = vxor.u32 %v361, 2147483648
        %v363 = vmul.f32 %v362, 1.442695
        %v364 = vpow.pop %v363
        %v365 = vadd.f32 %v364, 1.0
        %v366 = vrcp.pop %v365
        %v367 = vmul.f32 1.0, %v366
        %368 = vst [vmem:[%s264] sm:$0x1] %v367
        %v369 = vld [vmem:[%s228] sm:$0xf]
        %v370 = vmul.f32 %v367, 0.5
        %v371 = vsub.f32 1.0, %v370
        %v372 = vmul.f32 %v369, %v371
        %373 = vst [vmem:[%s258] sm:$0xf] %v372
        %s374 = sand.u32 %s124, 1
        %s375 = scalar_lea.sflag [#allocation4], %s374
        %s376 = sand.u32 %s124, 1
        %s377 = smul.addr %s376, 4
        %s378 = scalar_lea.vmem [#allocation5], %s377
        %s379 = sand.u32 %s152, 1
        %s380 = scalar_lea.sflag [#allocation7], %s379
        %s381 = sand.u32 %s152, 1
        %s382 = scalar_lea.vmem [#allocation6], %s381
        // Predicated region
        $region37: #{tpu_custom_call.1} parent=31 // pred_check
          %p383 = pneg %p134
        $region38: #{tpu_custom_call.1} parent=31 // pred_check_branch
          %385 = sbr.rel (%p383) target = $region40
        $region39: #{tpu_custom_call.1} parent=31 // pred_region
          %s387 = ssub.s32 64, 64
          %388 = vsyncadd %s375, %s387
          %s389 = sadd.s32 %s30, %s29
          %s390 = smul.addr %s389, 64
          %s391 = scalar_lea.hbm %s3, %s390
          %s393 = sshll.u32 %s378, 4
          %s394 = int_to_ptr.vmem [resolvable:$true] %s393
          %396 = dma.vmem_to_hbm [thread:$0]  %s394, 64, %s391, %s375
        $region40: #{tpu_custom_call.1} parent=31 // pred_fallthru
          _
        // Predicated region
        $region41: #{tpu_custom_call.1} parent=31 // pred_check
          %p397 = pneg %p162
        $region42: #{tpu_custom_call.1} parent=31 // pred_check_branch
          %399 = sbr.rel (%p397) target = $region44
        $region43: #{tpu_custom_call.1} parent=31 // pred_region
          %s401 = ssub.s32 16, 16
          %402 = vsyncadd %s380, %s401
          %s403 = sadd.s32 %s30, %s29
          %s404 = smul.addr %s403, 16
          %s405 = scalar_lea.hbm %s4, %s404
          %s407 = sshll.u32 %s382, 4
          %s408 = int_to_ptr.vmem [resolvable:$true] %s407
          %410 = dma.vmem_to_hbm [thread:$0]  %s408, 16, %s405, %s380
        $region44: #{tpu_custom_call.1} parent=31 // pred_fallthru
          _
      $region32: #{tpu_custom_call.1} parent=5 // pred_fallthru
        _
      %p411 = scmp.le.s32.totalorder 2, %s20
      // Predicated region
      $region45: #{tpu_custom_call.1} parent=5 // pred_check
        %p412 = pneg %p411
      $region46: #{tpu_custom_call.1} parent=5 // pred_check_branch
        %414 = sbr.rel (%p412) target = $region48
      $region47: #{tpu_custom_call.1} parent=5 // pred_region
        %s415 = ssub.s32 %s20, 2
        // Predicated region
        $region49: #{tpu_custom_call.1} parent=47 // pred_check
          %p416 = pneg %p140
        $region50: #{tpu_custom_call.1} parent=47 // pred_check_branch
          %418 = sbr.rel (%p416) target = $region52
        $region51: #{tpu_custom_call.1} parent=47 // pred_region
          %s419 = sand.u32 %s125, 1
          %s420 = scalar_lea.sflag [#allocation4], %s419
          %s421 = sand.u32 %s125, 1
          %s422 = smul.addr %s421, 4
          %s423 = scalar_lea.vmem [#allocation5], %s422
          %424 = dma.done %s420, 64
        $region52: #{tpu_custom_call.1} parent=47 // pred_fallthru
          _
        // Predicated region
        $region53: #{tpu_custom_call.1} parent=47 // pred_check
          %p425 = pneg %p168
        $region54: #{tpu_custom_call.1} parent=47 // pred_check_branch
          %427 = sbr.rel (%p425) target = $region56
        $region55: #{tpu_custom_call.1} parent=47 // pred_region
          %s428 = sand.u32 %s153, 1
          %s429 = scalar_lea.sflag [#allocation7], %s428
          %s430 = sand.u32 %s153, 1
          %s431 = scalar_lea.vmem [#allocation6], %s430
          %432 = dma.done %s429, 16
        $region56: #{tpu_custom_call.1} parent=47 // pred_fallthru
          _
      $region48: #{tpu_custom_call.1} parent=5 // pred_fallthru
        _
    $region6: #{tpu_custom_call.1} parent=1 // loop_footer
      %s24 = sadd.s32 1, %s20
    $region7: #{tpu_custom_call.1} parent=1 // loop_footer_branch
      %19 = sbr.rel target = $region3
    $region8: #{tpu_custom_call.1} parent=1 // loop_exit
      _
    %433 = vsyncpa [#allocation3], 1
    %s434 = scalar_lea.sflag [#allocation3], 1
    %435 = vsyncpa %s434, 1
    %436 = vsyncpa [#allocation4], 1
    %s437 = scalar_lea.sflag [#allocation4], 1
    %438 = vsyncpa %s437, 1
    %439 = vsyncpa [#allocation7], 1
    %s440 = scalar_lea.sflag [#allocation7], 1
    %441 = vsyncpa %s440, 1

</llo_original>
